<compile_context>
chip_gen: v6e
topology: v6e:2x2x1
jax: 0.10.0
libtpu: 0.0.40
codegen_flags: <defaults>
</compile_context>

<pallas_src>
import math

import jax
import jax.numpy as jnp
from jax.experimental import pallas as pl
from jax.experimental.pallas import tpu as pltpu


# ----------------------------------------------------------------------------- config
INPUT_DIM = 16
TIMESTEP_EMBED_DIM = 64
HALF_DIM = TIMESTEP_EMBED_DIM // 2            # 32
EMB_HIDDEN = TIMESTEP_EMBED_DIM * 2           # 128
HIDDEN_DIM = 256
BATCH = 16
TILE_B = 256                                  # batch tile for the gridded (large-batch) path


# ----------------------------------------------------------------------------- kernel
def _mish(z):
    # mish(z) = z * tanh(softplus(z)) = z * n / (n + 2) with n = e*(e+2), e = exp(z).
    # Single exp + exact EUP divide; clamp/select keeps z > 20 exact & overflow-free.
    e = jnp.exp(jnp.minimum(z, 20.0))
    n = e * (e + 2.0)
    y = z * n / (n + 2.0)
    return jnp.where(z > 20.0, z, y)


def timed_classifier_kernel(
    ts_ref,       # (TB, 1)            raw timesteps (f32)
    x_ref,        # (TB, INPUT_DIM)    f32
    freqs_ref,    # (1, HALF_DIM)      f32  precomputed sinusoidal frequencies
    w1_ref,       # (2, 32, 128)       bf16 time_mlp Linear 1, stacked [sin-half, cos-half]
    w2_ref,       # (128, 64)          bf16 time_mlp Linear 2
    w3x_ref,      # (16, 256)          bf16 mid_layer Linear 1, x-half of the concat weight
    w3t_ref,      # (64, 256)          bf16 mid_layer Linear 1, t-half of the concat weight
    w4_ref,       # (256, 256)         bf16 mid_layer Linear 2
    slab_ref,     # (8, 256)           f32  rows: b1|b2|b3|b4|b5|w5^T|pad|pad
    out_ref,      # (TB, 1)            f32
):
    ts = ts_ref[...]                                          # (TB, 1)

    # ---- sinusoidal positional embedding (freqs precomputed on host)
    args = ts * freqs_ref[...]                                # (TB, 32)
    sin_e = jnp.sin(args).astype(jnp.bfloat16)
    cos_e = jnp.cos(args).astype(jnp.bfloat16)

    # ---- unpack biases / head weight from the packed slab (static slices, no copies)
    b1 = slab_ref[0:1, 0:EMB_HIDDEN]                          # (1, 128)
    b2 = slab_ref[1:2, 0:TIMESTEP_EMBED_DIM]                  # (1, 64)
    b3 = slab_ref[2:3, :]                                     # (1, 256)
    b4 = slab_ref[3:4, :]                                     # (1, 256)
    b5 = slab_ref[4:5, 0:1]                                   # (1, 1)
    w5 = slab_ref[5:6, :]                                     # (1, 256)  (256 -> 1 head, transposed)

    # ---- time MLP: Linear -> Mish -> Linear
    # emb = [sin, cos]  =>  emb @ W1 == sin @ W1[:32] + cos @ W1[32:]  (no lane concat)
    h = (jnp.dot(sin_e, w1_ref[0], preferred_element_type=jnp.float32)
         + jnp.dot(cos_e, w1_ref[1], preferred_element_type=jnp.float32)
         + b1)
    h = _mish(h)
    t = jnp.dot(h.astype(jnp.bfloat16), w2_ref[...],
                preferred_element_type=jnp.float32) + b2       # (TB, 64)

    # ---- mid layer: cat([x, t]) @ W3  ==  x @ W3x + t @ W3t  (no lane concat)
    h = (jnp.dot(x_ref[...].astype(jnp.bfloat16), w3x_ref[...],
                 preferred_element_type=jnp.float32)
         + jnp.dot(t.astype(jnp.bfloat16), w3t_ref[...],
                   preferred_element_type=jnp.float32)
         + b3)
    h = _mish(h)
    h = jnp.dot(h.astype(jnp.bfloat16), w4_ref[...],
                preferred_element_type=jnp.float32) + b4
    h = _mish(h)

    # ---- final 256 -> 1 projection: VPU broadcast-multiply + lane reduce (no N=1 MXU pass)
    logits = jnp.sum(h * w5, axis=-1, keepdims=True) + b5
    out_ref[...] = _mish(logits).astype(out_ref.dtype)


# ----------------------------------------------------------------------------- wrapper
def timed_classifier_forward(x, timesteps, params, *, tile_b=TILE_B):
    B = x.shape[0]
    ts = timesteps.astype(jnp.float32).reshape(B, 1)
    x = x.astype(jnp.float32)
    freqs, w1, w2, w3x, w3t, w4, slab = params
    operands = (ts, x, freqs, w1, w2, w3x, w3t, w4, slab)

    # Small / medium batch: single grid-less invocation.  Whole batch + all weights
    # (~205 KB bf16 + 8 KB slab) resident in VMEM, no pipeline machinery.
    if B <= tile_b:
        vmem = pl.BlockSpec(memory_space=pltpu.MemorySpace.VMEM)
        return pl.pallas_call(
            timed_classifier_kernel,
            out_shape=jax.ShapeDtypeStruct((B, 1), jnp.float32),
            in_specs=[vmem] * len(operands),
            out_specs=vmem,
        )(*operands)

    # Large batch: 1-D parallel batch grid.  Weights/biases use constant index_maps so they
    # are DMA'd once and stay VMEM-resident; batch tiles of TILE_B rows fill the MXU and
    # (on v7x) shard across both TensorCores.
    num_tiles = pl.cdiv(B, tile_b)
    padded_b = num_tiles * tile_b
    if padded_b != B:
        ts = jnp.pad(ts, ((0, padded_b - B), (0, 0)))
        x = jnp.pad(x, ((0, padded_b - B), (0, 0)))

    grid_spec = pltpu.PrefetchScalarGridSpec(
        num_scalar_prefetch=0,
        grid=(num_tiles,),
        in_specs=[
            pl.BlockSpec((tile_b, 1), lambda i: (i, 0)),                        # ts
            pl.BlockSpec((tile_b, INPUT_DIM), lambda i: (i, 0)),                # x
            pl.BlockSpec((1, HALF_DIM), lambda i: (0, 0)),                      # freqs
            pl.BlockSpec((2, HALF_DIM, EMB_HIDDEN), lambda i: (0, 0, 0)),       # w1 (stacked)
            pl.BlockSpec((EMB_HIDDEN, TIMESTEP_EMBED_DIM), lambda i: (0, 0)),   # w2
            pl.BlockSpec((INPUT_DIM, HIDDEN_DIM), lambda i: (0, 0)),            # w3x
            pl.BlockSpec((TIMESTEP_EMBED_DIM, HIDDEN_DIM), lambda i: (0, 0)),   # w3t
            pl.BlockSpec((HIDDEN_DIM, HIDDEN_DIM), lambda i: (0, 0)),           # w4
            pl.BlockSpec((8, HIDDEN_DIM), lambda i: (0, 0)),                    # bias/head slab
        ],
        out_specs=pl.BlockSpec((tile_b, 1), lambda i: (i, 0)),
    )
    out = pl.pallas_call(
        timed_classifier_kernel,
        out_shape=jax.ShapeDtypeStruct((padded_b, 1), jnp.float32),
        grid_spec=grid_spec,
        compiler_params=pltpu.CompilerParams(dimension_semantics=("parallel",)),
    )(ts, x, freqs, w1, w2, w3x, w3t, w4, slab)
    return out[:B]


# ----------------------------------------------------------------------------- params
def init_params(key):
    """PyTorch-style uniform +/-1/sqrt(fan_in); weights stored [in, out]."""
    def linear(k, fan_in, fan_out):
        kw, kb = jax.random.split(k)
        bound = 1.0 / math.sqrt(fan_in)
        w = jax.random.uniform(kw, (fan_in, fan_out), jnp.float32, -bound, bound)
        b = jax.random.uniform(kb, (fan_out,), jnp.float32, -bound, bound)
        return w, b

    k1, k2, k3, k4, k5 = jax.random.split(key, 5)
    w1, b1 = linear(k1, TIMESTEP_EMBED_DIM, EMB_HIDDEN)                # 64  -> 128
    w2, b2 = linear(k2, EMB_HIDDEN, TIMESTEP_EMBED_DIM)                # 128 -> 64
    w3, b3 = linear(k3, INPUT_DIM + TIMESTEP_EMBED_DIM, HIDDEN_DIM)    # 80  -> 256
    w4, b4 = linear(k4, HIDDEN_DIM, HIDDEN_DIM)                        # 256 -> 256
    w5, b5 = linear(k5, HIDDEN_DIM, 1)                                 # 256 -> 1

    # Precomputed sinusoidal frequency table (batch invariant).
    scale = math.log(10000.0) / (HALF_DIM - 1)
    freqs = jnp.exp(jnp.arange(HALF_DIM, dtype=jnp.float32) * -scale).reshape(1, HALF_DIM)

    # bf16 MXU weights.
    w1_stacked = jnp.stack([w1[:HALF_DIM], w1[HALF_DIM:]], axis=0).astype(jnp.bfloat16)  # (2,32,128)
    w2_bf = w2.astype(jnp.bfloat16)
    w3x = w3[:INPUT_DIM].astype(jnp.bfloat16)
    w3t = w3[INPUT_DIM:].astype(jnp.bfloat16)
    w4_bf = w4.astype(jnp.bfloat16)

    # Packed f32 slab: biases + transposed 256->1 head weight (VPU path stays f32).
    slab = jnp.zeros((8, HIDDEN_DIM), jnp.float32)
    slab = slab.at[0, :EMB_HIDDEN].set(b1)
    slab = slab.at[1, :TIMESTEP_EMBED_DIM].set(b2)
    slab = slab.at[2, :].set(b3)
    slab = slab.at[3, :].set(b4)
    slab = slab.at[4, 0].set(b5[0])
    slab = slab.at[5, :].set(w5[:, 0])

    return (freqs, w1_stacked, w2_bf, w3x, w3t, w4_bf, slab)


# ----------------------------------------------------------------------------- reference (pure JAX)
def reference_forward(x, timesteps, params):
    """f32 reference using the same (bf16-rounded) weights; exact tanh(softplus) Mish."""
    freqs, w1_stacked, w2, w3x, w3t, w4, slab = params
    b1 = slab[0, :EMB_HIDDEN]
    b2 = slab[1, :TIMESTEP_EMBED_DIM]
    b3 = slab[2]
    b4 = slab[3]
    b5 = slab[4, 0]
    w5 = slab[5]                                                        # (256,)

    def mish(z):
        return z * jnp.tanh(jax.nn.softplus(z))

    args = timesteps.astype(jnp.float32)[:, None] * freqs[0][None, :]
    emb = jnp.concatenate([jnp.sin(args), jnp.cos(args)], axis=-1)      # (B, 64)

    w1 = jnp.concatenate([w1_stacked[0], w1_stacked[1]], axis=0).astype(jnp.float32)
    w3 = jnp.concatenate([w3x, w3t], axis=0).astype(jnp.float32)

    t = mish(emb @ w1 + b1) @ w2.astype(jnp.float32) + b2
    h = jnp.concatenate([x.astype(jnp.float32), t], axis=1)
    h = mish(h @ w3 + b3)
    h = mish(h @ w4.astype(jnp.float32) + b4)
    logits = h @ w5[:, None] + b5
    return mish(logits)


# ----------------------------------------------------------------------------- main
if __name__ == "__main__":
    key = jax.random.PRNGKey(0)
    kp, kx, kt, kx2, kt2 = jax.random.split(key, 5)

    params = init_params(kp)

    # --- small batch: grid-less path
    x = jax.random.normal(kx, (BATCH, INPUT_DIM), jnp.float32)
    timesteps = jax.random.randint(kt, (BATCH,), 0, 1000).astype(jnp.float32)

    out = jax.block_until_ready(timed_classifier_forward(x, timesteps, params))
    ref = reference_forward(x, timesteps, params)
    assert out.shape == (BATCH, 1)
    max_diff = float(jnp.max(jnp.abs(out - ref)))
    # tolerance covers bf16 activation rounding at the MXU inputs
    assert jnp.allclose(out, ref, atol=3e-2, rtol=3e-2), f"small-batch max abs diff = {max_diff}"

    # --- large batch: 1-D parallel batch grid (exercises padding + resident weights)
    B2 = 500
    x2 = jax.random.normal(kx2, (B2, INPUT_DIM), jnp.float32)
    timesteps2 = jax.random.randint(kt2, (B2,), 0, 1000).astype(jnp.float32)

    out2 = jax.block_until_ready(timed_classifier_forward(x2, timesteps2, params, tile_b=TILE_B))
    ref2 = reference_forward(x2, timesteps2, params)
    assert out2.shape == (B2, 1)
    max_diff2 = float(jnp.max(jnp.abs(out2 - ref2)))
    assert jnp.allclose(out2, ref2, atol=3e-2, rtol=3e-2), f"large-batch max abs diff = {max_diff2}"

    print("KERNEL_OK")
</pallas_src>

<mosaic_0001>
module attributes {stable_mosaic.version = 11 : i64} {
  func.func @timed_classifier_kernel(%arg0: memref<16x1xf32, #tpu.memory_space<vmem>>, %arg1: memref<16x16xf32, #tpu.memory_space<vmem>>, %arg2: memref<1x32xf32, #tpu.memory_space<vmem>>, %arg3: memref<2x32x128xbf16, #tpu.memory_space<vmem>>, %arg4: memref<128x64xbf16, #tpu.memory_space<vmem>>, %arg5: memref<16x256xbf16, #tpu.memory_space<vmem>>, %arg6: memref<64x256xbf16, #tpu.memory_space<vmem>>, %arg7: memref<256x256xbf16, #tpu.memory_space<vmem>>, %arg8: memref<8x256xf32, #tpu.memory_space<vmem>>, %arg9: memref<16x1xf32, #tpu.memory_space<vmem>>) attributes {dimension_semantics = [], scalar_prefetch = 0 : i64, scratch_operands = 0 : i64, tpu.core_type = #tpu.core_type<tc>} {
    %c0 = arith.constant 0 : index
    %c0_0 = arith.constant 0 : index
    %0 = vector.load %arg0[%c0, %c0_0] : memref<16x1xf32, #tpu.memory_space<vmem>>, vector<16x1xf32>
    %c0_1 = arith.constant 0 : index
    %c0_2 = arith.constant 0 : index
    %1 = vector.load %arg2[%c0_1, %c0_2] : memref<1x32xf32, #tpu.memory_space<vmem>>, vector<1x32xf32>
    %2 = vector.broadcast %0 : vector<16x1xf32> to vector<16x32xf32>
    %3 = vector.broadcast %1 : vector<1x32xf32> to vector<16x32xf32>
    %4 = arith.mulf %2, %3 : vector<16x32xf32>
    %5 = math.sin %4 : vector<16x32xf32>
    %6 = arith.truncf %5 : vector<16x32xf32> to vector<16x32xbf16>
    %7 = math.cos %4 : vector<16x32xf32>
    %8 = arith.truncf %7 : vector<16x32xf32> to vector<16x32xbf16>
    %c0_3 = arith.constant 0 : index
    %c0_4 = arith.constant 0 : index
    %9 = vector.load %arg8[%c0_3, %c0_4] : memref<8x256xf32, #tpu.memory_space<vmem>>, vector<1x128xf32>
    %c1 = arith.constant 1 : index
    %c0_5 = arith.constant 0 : index
    %10 = vector.load %arg8[%c1, %c0_5] : memref<8x256xf32, #tpu.memory_space<vmem>>, vector<1x64xf32>
    %c2 = arith.constant 2 : index
    %c0_6 = arith.constant 0 : index
    %11 = vector.load %arg8[%c2, %c0_6] : memref<8x256xf32, #tpu.memory_space<vmem>>, vector<1x256xf32>
    %c3 = arith.constant 3 : index
    %c0_7 = arith.constant 0 : index
    %12 = vector.load %arg8[%c3, %c0_7] : memref<8x256xf32, #tpu.memory_space<vmem>>, vector<1x256xf32>
    %c4 = arith.constant 4 : index
    %c0_8 = arith.constant 0 : index
    %13 = vector.load %arg8[%c4, %c0_8] : memref<8x256xf32, #tpu.memory_space<vmem>>, vector<1x1xf32>
    %c5 = arith.constant 5 : index
    %c0_9 = arith.constant 0 : index
    %14 = vector.load %arg8[%c5, %c0_9] : memref<8x256xf32, #tpu.memory_space<vmem>>, vector<1x256xf32>
    %c0_10 = arith.constant 0 : index
    %c0_11 = arith.constant 0 : index
    %c0_12 = arith.constant 0 : index
    %15 = vector.load %arg3[%c0_10, %c0_11, %c0_12] : memref<2x32x128xbf16, #tpu.memory_space<vmem>>, vector<1x32x128xbf16>
    %16 = vector.shape_cast %15 : vector<1x32x128xbf16> to vector<32x128xbf16>
    %cst = arith.constant dense<0.000000e+00> : vector<16x128xf32>
    %17 = tpu.matmul %6, %16, %cst {dimension_numbers = #tpu.dot_dimension_numbers<[1], [0], [0], [1], [0, 0, 1, 1], [], []>} : vector<16x32xbf16>, vector<32x128xbf16>, vector<16x128xf32> -> vector<16x128xf32>
    %c1_13 = arith.constant 1 : index
    %c0_14 = arith.constant 0 : index
    %c0_15 = arith.constant 0 : index
    %18 = vector.load %arg3[%c1_13, %c0_14, %c0_15] : memref<2x32x128xbf16, #tpu.memory_space<vmem>>, vector<1x32x128xbf16>
    %19 = vector.shape_cast %18 : vector<1x32x128xbf16> to vector<32x128xbf16>
    %cst_16 = arith.constant dense<0.000000e+00> : vector<16x128xf32>
    %20 = tpu.matmul %8, %19, %cst_16 {dimension_numbers = #tpu.dot_dimension_numbers<[1], [0], [0], [1], [0, 0, 1, 1], [], []>} : vector<16x32xbf16>, vector<32x128xbf16>, vector<16x128xf32> -> vector<16x128xf32>
    %21 = arith.addf %17, %20 : vector<16x128xf32>
    %22 = vector.broadcast %9 : vector<1x128xf32> to vector<16x128xf32>
    %23 = arith.addf %21, %22 : vector<16x128xf32>
    %cst_17 = arith.constant 2.000000e+01 : f32
    %24 = vector.broadcast %cst_17 : f32 to vector<16x128xf32>
    %25 = arith.minimumf %23, %24 : vector<16x128xf32>
    %26 = math.exp %25 : vector<16x128xf32>
    %cst_18 = arith.constant 2.000000e+00 : f32
    %27 = vector.broadcast %cst_18 : f32 to vector<16x128xf32>
    %28 = arith.addf %26, %27 : vector<16x128xf32>
    %29 = arith.mulf %26, %28 : vector<16x128xf32>
    %30 = arith.mulf %23, %29 : vector<16x128xf32>
    %cst_19 = arith.constant 2.000000e+00 : f32
    %31 = vector.broadcast %cst_19 : f32 to vector<16x128xf32>
    %32 = arith.addf %29, %31 : vector<16x128xf32>
    %33 = arith.divf %30, %32 : vector<16x128xf32>
    %cst_20 = arith.constant 2.000000e+01 : f32
    %34 = vector.broadcast %cst_20 : f32 to vector<16x128xf32>
    %35 = arith.cmpf ogt, %23, %34 : vector<16x128xf32>
    %36 = arith.select %35, %23, %33 : vector<16x128xi1>, vector<16x128xf32>
    %37 = arith.truncf %36 : vector<16x128xf32> to vector<16x128xbf16>
    %c0_21 = arith.constant 0 : index
    %c0_22 = arith.constant 0 : index
    %38 = vector.load %arg4[%c0_21, %c0_22] : memref<128x64xbf16, #tpu.memory_space<vmem>>, vector<128x64xbf16>
    %cst_23 = arith.constant dense<0.000000e+00> : vector<16x64xf32>
    %39 = tpu.matmul %37, %38, %cst_23 {dimension_numbers = #tpu.dot_dimension_numbers<[1], [0], [0], [1], [0, 0, 1, 1], [], []>} : vector<16x128xbf16>, vector<128x64xbf16>, vector<16x64xf32> -> vector<16x64xf32>
    %40 = vector.broadcast %10 : vector<1x64xf32> to vector<16x64xf32>
    %41 = arith.addf %39, %40 : vector<16x64xf32>
    %c0_24 = arith.constant 0 : index
    %c0_25 = arith.constant 0 : index
    %42 = vector.load %arg1[%c0_24, %c0_25] : memref<16x16xf32, #tpu.memory_space<vmem>>, vector<16x16xf32>
    %43 = arith.truncf %42 : vector<16x16xf32> to vector<16x16xbf16>
    %c0_26 = arith.constant 0 : index
    %c0_27 = arith.constant 0 : index
    %44 = vector.load %arg5[%c0_26, %c0_27] : memref<16x256xbf16, #tpu.memory_space<vmem>>, vector<16x256xbf16>
    %cst_28 = arith.constant dense<0.000000e+00> : vector<16x256xf32>
    %45 = tpu.matmul %43, %44, %cst_28 {dimension_numbers = #tpu.dot_dimension_numbers<[1], [0], [0], [1], [0, 0, 1, 1], [], []>} : vector<16x16xbf16>, vector<16x256xbf16>, vector<16x256xf32> -> vector<16x256xf32>
    %46 = arith.truncf %41 : vector<16x64xf32> to vector<16x64xbf16>
    %c0_29 = arith.constant 0 : index
    %c0_30 = arith.constant 0 : index
    %47 = vector.load %arg6[%c0_29, %c0_30] : memref<64x256xbf16, #tpu.memory_space<vmem>>, vector<64x256xbf16>
    %cst_31 = arith.constant dense<0.000000e+00> : vector<16x256xf32>
    %48 = tpu.matmul %46, %47, %cst_31 {dimension_numbers = #tpu.dot_dimension_numbers<[1], [0], [0], [1], [0, 0, 1, 1], [], []>} : vector<16x64xbf16>, vector<64x256xbf16>, vector<16x256xf32> -> vector<16x256xf32>
    %49 = arith.addf %45, %48 : vector<16x256xf32>
    %50 = vector.broadcast %11 : vector<1x256xf32> to vector<16x256xf32>
    %51 = arith.addf %49, %50 : vector<16x256xf32>
    %cst_32 = arith.constant 2.000000e+01 : f32
    %52 = vector.broadcast %cst_32 : f32 to vector<16x256xf32>
    %53 = arith.minimumf %51, %52 : vector<16x256xf32>
    %54 = math.exp %53 : vector<16x256xf32>
    %cst_33 = arith.constant 2.000000e+00 : f32
    %55 = vector.broadcast %cst_33 : f32 to vector<16x256xf32>
    %56 = arith.addf %54, %55 : vector<16x256xf32>
    %57 = arith.mulf %54, %56 : vector<16x256xf32>
    %58 = arith.mulf %51, %57 : vector<16x256xf32>
    %cst_34 = arith.constant 2.000000e+00 : f32
    %59 = vector.broadcast %cst_34 : f32 to vector<16x256xf32>
    %60 = arith.addf %57, %59 : vector<16x256xf32>
    %61 = arith.divf %58, %60 : vector<16x256xf32>
    %cst_35 = arith.constant 2.000000e+01 : f32
    %62 = vector.broadcast %cst_35 : f32 to vector<16x256xf32>
    %63 = arith.cmpf ogt, %51, %62 : vector<16x256xf32>
    %64 = arith.select %63, %51, %61 : vector<16x256xi1>, vector<16x256xf32>
    %65 = arith.truncf %64 : vector<16x256xf32> to vector<16x256xbf16>
    %c0_36 = arith.constant 0 : index
    %c0_37 = arith.constant 0 : index
    %66 = vector.load %arg7[%c0_36, %c0_37] : memref<256x256xbf16, #tpu.memory_space<vmem>>, vector<256x256xbf16>
    %cst_38 = arith.constant dense<0.000000e+00> : vector<16x256xf32>
    %67 = tpu.matmul %65, %66, %cst_38 {dimension_numbers = #tpu.dot_dimension_numbers<[1], [0], [0], [1], [0, 0, 1, 1], [], []>} : vector<16x256xbf16>, vector<256x256xbf16>, vector<16x256xf32> -> vector<16x256xf32>
    %68 = vector.broadcast %12 : vector<1x256xf32> to vector<16x256xf32>
    %69 = arith.addf %67, %68 : vector<16x256xf32>
    %cst_39 = arith.constant 2.000000e+01 : f32
    %70 = vector.broadcast %cst_39 : f32 to vector<16x256xf32>
    %71 = arith.minimumf %69, %70 : vector<16x256xf32>
    %72 = math.exp %71 : vector<16x256xf32>
    %cst_40 = arith.constant 2.000000e+00 : f32
    %73 = vector.broadcast %cst_40 : f32 to vector<16x256xf32>
    %74 = arith.addf %72, %73 : vector<16x256xf32>
    %75 = arith.mulf %72, %74 : vector<16x256xf32>
    %76 = arith.mulf %69, %75 : vector<16x256xf32>
    %cst_41 = arith.constant 2.000000e+00 : f32
    %77 = vector.broadcast %cst_41 : f32 to vector<16x256xf32>
    %78 = arith.addf %75, %77 : vector<16x256xf32>
    %79 = arith.divf %76, %78 : vector<16x256xf32>
    %cst_42 = arith.constant 2.000000e+01 : f32
    %80 = vector.broadcast %cst_42 : f32 to vector<16x256xf32>
    %81 = arith.cmpf ogt, %69, %80 : vector<16x256xf32>
    %82 = arith.select %81, %69, %79 : vector<16x256xi1>, vector<16x256xf32>
    %83 = vector.broadcast %14 : vector<1x256xf32> to vector<16x256xf32>
    %84 = arith.mulf %82, %83 : vector<16x256xf32>
    %cst_43 = arith.constant dense<0.000000e+00> : vector<16xf32>
    %85 = vector.multi_reduction <add>, %84, %cst_43 [1] : vector<16x256xf32> to vector<16xf32>
    %86 = vector.shape_cast %85 : vector<16xf32> to vector<16x1xf32>
    %87 = vector.broadcast %13 : vector<1x1xf32> to vector<16x1xf32>
    %88 = arith.addf %86, %87 : vector<16x1xf32>
    %cst_44 = arith.constant 2.000000e+01 : f32
    %89 = vector.broadcast %cst_44 : f32 to vector<16x1xf32>
    %90 = arith.minimumf %88, %89 : vector<16x1xf32>
    %91 = math.exp %90 : vector<16x1xf32>
    %cst_45 = arith.constant 2.000000e+00 : f32
    %92 = vector.broadcast %cst_45 : f32 to vector<16x1xf32>
    %93 = arith.addf %91, %92 : vector<16x1xf32>
    %94 = arith.mulf %91, %93 : vector<16x1xf32>
    %95 = arith.mulf %88, %94 : vector<16x1xf32>
    %cst_46 = arith.constant 2.000000e+00 : f32
    %96 = vector.broadcast %cst_46 : f32 to vector<16x1xf32>
    %97 = arith.addf %94, %96 : vector<16x1xf32>
    %98 = arith.divf %95, %97 : vector<16x1xf32>
    %cst_47 = arith.constant 2.000000e+01 : f32
    %99 = vector.broadcast %cst_47 : f32 to vector<16x1xf32>
    %100 = arith.cmpf ogt, %88, %99 : vector<16x1xf32>
    %101 = arith.select %100, %88, %98 : vector<16x1xi1>, vector<16x1xf32>
    %c0_48 = arith.constant 0 : index
    %c0_49 = arith.constant 0 : index
    %102 = vector.load %arg9[%c0_48, %c0_49] : memref<16x1xf32, #tpu.memory_space<vmem>>, vector<16x1xf32>
    tpu.vector_store %arg9[%c0_48, %c0_49], %101 {strides = array<i32>} : memref<16x1xf32, #tpu.memory_space<vmem>>, vector<16x1xf32>,
    return
  }
}

</mosaic_0001>

<llo_original>
// kernel: tpu_custom_call.1
$region0: #{tpu_custom_call.1}
  #allocation0 [shape = 'u32[]', space=smem, size = 0x4, offset = 0x4, fixed_abs, tag = 'smem constant byte address 0x4 - core index']
  #allocation1 [shape = 'u32[144,128]{1,0:T(1,128)}', space=vmem, size = 0x12000, scoped, tag = 'internal scratch']
  %s0 = inlined_call_operand.vmem [shape: f32[16,1], index: 0, kind: input, shape index: {}]
  %s1 = inlined_call_operand.vmem [shape: f32[16,16], index: 1, kind: input, shape index: {}]
  %s2 = inlined_call_operand.vmem [shape: f32[1,32], index: 2, kind: input, shape index: {}]
  %s3 = inlined_call_operand.vmem [shape: bf16[2,32,128], index: 3, kind: input, shape index: {}]
  %s4 = inlined_call_operand.vmem [shape: bf16[128,64], index: 4, kind: input, shape index: {}]
  %s5 = inlined_call_operand.hbm [shape: bf16[16,256], index: 5, kind: input, shape index: {}]
  %s6 = inlined_call_operand.vmem [shape: bf16[64,256], index: 6, kind: input, shape index: {}]
  %s7 = inlined_call_operand.hbm [shape: bf16[256,256], index: 7, kind: input, shape index: {}]
  %s8 = inlined_call_operand.hbm [shape: f32[8,256], index: 8, kind: input, shape index: {}]
  %s9 = inlined_call_operand.vmem [shape: f32[16,1], index: 9, kind: output, shape index: {}]
  %s10 = sld [smem:[#allocation0]]
  $region58: #{tpu_custom_call.1} parent=0
    _
  %s12 = ssub.s32 1, %s10
  %s13 = scalar_select 0, %s12, %s10
  $region1: #{tpu_custom_call.1} parent=0
    #allocation2 [shape = 'u8[8192]{0}', space=vmem, size = 0x2000, scoped, tag = 'input window, operand 5, single buffered']
    #allocation3 [shape = 's32[1]{0}', space=sflag, size = 0x4, scoped, tag = 'scoped memory for tpu_custom_call.1']
    #allocation4 [shape = 'u8[131072]{0}', space=vmem, size = 0x20000, scoped, tag = 'input window, operand 7, single buffered']
    #allocation5 [shape = 's32[1]{0}', space=sflag, size = 0x4, scoped, tag = 'scoped memory for tpu_custom_call.1']
    #allocation6 [shape = 'u8[8192]{0}', space=vmem, size = 0x2000, scoped, tag = 'input window, operand 8, single buffered']
    %14 = vsyncpa [#allocation3], 0
    %15 = vsyncpa [#allocation5], 0
    // Predicated region
    $region2: #{tpu_custom_call.1} parent=1 // pred_check
      _
    $region3: #{tpu_custom_call.1} parent=1 // pred_check_branch
      %17 = sbr.rel (0) target = $region5
    $region4: #{tpu_custom_call.1} parent=1 // pred_region
      _
    $region5: #{tpu_custom_call.1} parent=1 // pred_fallthru
      _
    // Predicated region
    $region6: #{tpu_custom_call.1} parent=1 // pred_check
      _
    $region7: #{tpu_custom_call.1} parent=1 // pred_check_branch
      %19 = sbr.rel (0) target = $region9
    $region8: #{tpu_custom_call.1} parent=1 // pred_region
      _
    $region9: #{tpu_custom_call.1} parent=1 // pred_fallthru
      _
    // Predicated region
    $region10: #{tpu_custom_call.1} parent=1 // pred_check
      _
    $region11: #{tpu_custom_call.1} parent=1 // pred_check_branch
      %21 = sbr.rel (0) target = $region13
    $region12: #{tpu_custom_call.1} parent=1 // pred_region
      _
    $region13: #{tpu_custom_call.1} parent=1 // pred_fallthru
      _
    // Predicated region
    $region14: #{tpu_custom_call.1} parent=1 // pred_check
      _
    $region15: #{tpu_custom_call.1} parent=1 // pred_check_branch
      %23 = sbr.rel (0) target = $region17
    $region16: #{tpu_custom_call.1} parent=1 // pred_region
      _
    $region17: #{tpu_custom_call.1} parent=1 // pred_fallthru
      _
    // Predicated region
    $region18: #{tpu_custom_call.1} parent=1 // pred_check
      _
    $region19: #{tpu_custom_call.1} parent=1 // pred_check_branch
      %25 = sbr.rel (0) target = $region21
    $region20: #{tpu_custom_call.1} parent=1 // pred_region
      _
    $region21: #{tpu_custom_call.1} parent=1 // pred_fallthru
      _
    // Predicated region
    $region22: #{tpu_custom_call.1} parent=1 // pred_check
      _
    $region23: #{tpu_custom_call.1} parent=1 // pred_check_branch
      %27 = sbr.rel (0) target = $region25
    $region24: #{tpu_custom_call.1} parent=1 // pred_region
      %s29 = ssub.s32 256, 256
      %30 = vsyncadd [#allocation3], %s29
      %s31 = sshll.u32 [#allocation2], 4
      %s32 = int_to_ptr.vmem [resolvable:$true] %s31
      %37 = dma.hbm_to_vmem [thread:$0]  %s5, 256, %s32, [#allocation3], 128, 128, 8
    $region25: #{tpu_custom_call.1} parent=1 // pred_fallthru
      _
    // Predicated region
    $region26: #{tpu_custom_call.1} parent=1 // pred_check
      _
    $region27: #{tpu_custom_call.1} parent=1 // pred_check_branch
      %39 = sbr.rel (0) target = $region29
    $region28: #{tpu_custom_call.1} parent=1 // pred_region
      _
    $region29: #{tpu_custom_call.1} parent=1 // pred_fallthru
      _
    // Predicated region
    $region30: #{tpu_custom_call.1} parent=1 // pred_check
      _
    $region31: #{tpu_custom_call.1} parent=1 // pred_check_branch
      %41 = sbr.rel (0) target = $region33
    $region32: #{tpu_custom_call.1} parent=1 // pred_region
      %s43 = ssub.s32 4096, 4096
      %44 = vsyncadd [#allocation5], %s43
      %s45 = sshll.u32 [#allocation4], 4
      %s46 = int_to_ptr.vmem [resolvable:$true] %s45
      %51 = dma.hbm_to_vmem [thread:$0]  %s7, 4096, %s46, [#allocation5], 128, 128, 8
    $region33: #{tpu_custom_call.1} parent=1 // pred_fallthru
      _
    // Predicated region
    $region34: #{tpu_custom_call.1} parent=1 // pred_check
      _
    $region35: #{tpu_custom_call.1} parent=1 // pred_check_branch
      %53 = sbr.rel (0) target = $region37
    $region36: #{tpu_custom_call.1} parent=1 // pred_region
      %s55 = ssub.s32 256, 256
      %56 = vsyncadd [#allocation5], %s55
      %s58 = sshll.u32 [#allocation6], 4
      %s59 = int_to_ptr.vmem [resolvable:$true] %s58
      %61 = dma.hbm_to_vmem [thread:$0]  %s8, 256, %s59, [#allocation5]
    $region37: #{tpu_custom_call.1} parent=1 // pred_fallthru
      _
    // Predicated region
    $region38: #{tpu_custom_call.1} parent=1 // pred_check
      _
    $region39: #{tpu_custom_call.1} parent=1 // pred_check_branch
      %63 = sbr.rel (0) target = $region41
    $region40: #{tpu_custom_call.1} parent=1 // pred_region
      %64 = dma.done [#allocation3], 256
    $region41: #{tpu_custom_call.1} parent=1 // pred_fallthru
      _
    // Predicated region
    $region42: #{tpu_custom_call.1} parent=1 // pred_check
      _
    $region43: #{tpu_custom_call.1} parent=1 // pred_check_branch
      %66 = sbr.rel (0) target = $region45
    $region44: #{tpu_custom_call.1} parent=1 // pred_region
      %67 = dma.done [#allocation5], 4096
    $region45: #{tpu_custom_call.1} parent=1 // pred_fallthru
      _
    // Predicated region
    $region46: #{tpu_custom_call.1} parent=1 // pred_check
      _
    $region47: #{tpu_custom_call.1} parent=1 // pred_check_branch
      %69 = sbr.rel (0) target = $region49
    $region48: #{tpu_custom_call.1} parent=1 // pred_region
      %70 = dma.done [#allocation5], 256
    $region49: #{tpu_custom_call.1} parent=1 // pred_fallthru
      _
    %v72 = vld [vmem:[%s0] sm:$0xff]
    %v73 = vld [vmem:[%s0 + $0x8] sm:$0xff]
    %v74 = vld [vmem:[%s2] sm:$0x1]
    %76 = vset.pattern.permute.xlu0 0
    %77 = vperm.xlu0 %76, %v72
    %v78 = vpop.permute.xlu0 %77
    %81 = vset.pattern.permute.xlu0 0
    %82 = vperm.xlu0 %81, %v73
    %v83 = vpop.permute.xlu0 %82
    %v86 = vlaneseq
    %v87 = vshrl.u32 %v86, 7
    %v88 = vsub.s32 0, %v87
    %v89 = vrot.slane %v74, %v88
    %v91 = vmul.f32 %v78, %v89
    %v92 = vmul.f32 %v83, %v89
    %v93 = vand.u32 2147483647, %v91
    %vm94 = vcmp.le.f32.partialorder %v93, 0.7853982
    %vm95 = vcmp.lt.s32.totalorder %v91, 0
    %v96 = vand.u32 %v91, 2139095040
    %v97 = vshrl.u32 %v96, 23
    %v98 = vsub.s32 %v97, 127
    %v99 = vand.u32 2147483647, %v91
    %v100 = vand.u32 %v99, 8388607
    %v101 = vor.u32 %v100, 8388608
    %v102 = vsub.s32 0, %v101
    %v103 = vadd.s32 %v98, 1
    %vm104 = vcmp.gt.s32.totalorder %v103, 0
    %v105 = vsel %vm104, %v103, 0
    %v106 = vshrl.u32 %v105, 5
    %v107 = vand.u32 %v105, 31
    %v108 = vsub.s32 32, %v107
    %v109 = vshrl.u32 683565275, %v108
    %v110 = vshll.u32 683565275, %v107
    %v111 = vshrl.u32 2475754826, %v108
    %v112 = vor.u32 %v110, %v111
    %v113 = vshll.u32 2475754826, %v107
    %v114 = vshrl.u32 2131351028, %v108
    %v115 = vor.u32 %v113, %v114
    %v116 = vshll.u32 2131351028, %v107
    %v117 = vshrl.u32 2102212464, %v108
    %v118 = vor.u32 %v116, %v117
    %v119 = vshll.u32 2102212464, %v107
    %v120 = vshrl.u32 920167782, %v108
    %v121 = vor.u32 %v119, %v120
    %v122 = vshll.u32 920167782, %v107
    %v123 = vshrl.u32 1326507024, %v108
    %v124 = vor.u32 %v122, %v123
    %vm125 = vcmp.lt.s32.totalorder %v106, 1
    %vm126 = vcmp.lt.s32.totalorder %v106, 2
    %vm127 = vcmp.lt.s32.totalorder %v106, 3
    %vm128 = vcmp.lt.s32.totalorder %v106, 4
    %v129 = vsel %vm125, %v109, %v112
    %v130 = vsel %vm128, %v118, 2102212464
    %v131 = vsel %vm127, %v115, %v130
    %v132 = vsel %vm126, %v129, %v131
    %v133 = vsel %vm125, %v112, %v115
    %v134 = vsel %vm128, %v121, 920167782
    %v135 = vsel %vm127, %v118, %v134
    %v136 = vsel %vm126, %v133, %v135
    %v137 = vsel %vm125, %v115, %v118
    %v138 = vsel %vm128, %v124, 1326507024
    %v139 = vsel %vm127, %v121, %v138
    %v140 = vsel %vm126, %v137, %v139
    %v141 = vshll.u32 %v101, 8
    %v142 = vmul.u32.u64.compose %v141, %v140
    %v143 = vextract.low.u32 %v142
    %v144 = vextract.high.u32 %v142
    %v145 = vmul.u32.u64.compose %v141, %v136
    %v146 = vextract.low.u32 %v145
    %v147 = vextract.high.u32 %v145
    %v148 = vmul.u32 %v141, %v132
    %v149 = vadd.s32 %v144, %v146
    %vm150 = vc.u32 %v144, %v146
    %v151 = vadd.s32 %v147, 1
    %v152 = vsel %vm150, %v151, %v147
    %v153 = vadd.s32 %v148, %v152
    %v154 = vadd.s32 %v153, 536870912
    %v155 = vshrl.u32 %v154, 30
    %v156 = vshll.u32 %v155, 30
    %v157 = vsub.s32 %v153, %v156
    %vm158 = vcmp.lt.s32.totalorder %v157, 0
    %v159 = vsub.s32 0, %v157
    %v160 = vsel %vm158, %v159, %v157
    %v161 = vclz %v160
    %v162 = vsub.s32 %v161, 2
    %vm163 = vcmp.gt.s32.totalorder 0, %v162
    %v164 = vsel %vm163, 0, %v162
    %v165 = vsub.s32 32, %v164
    %v166 = vshll.u32 %v157, %v164
    %v167 = vshrl.u32 %v149, %v165
    %v168 = vor.u32 %v166, %v167
    %v169 = vsub.s32 4294967266, %v164
    %v170 = vadd.s32 %v169, 127
    %v171 = vshll.u32 %v170, 23
    %v172 = vor.u32 4788187, %v171
    %v173 = vand.u32 2147483647, %v172
    %v175 = vcvt.s32.f32 %v168
    %v176 = vmul.f32 %v175, %v173
    %v177 = vxor.u32 %v176, 2147483648
    %v178 = vsel %vm95, %v177, %v176
    %v179 = vsub.s32 4, %v155
    %v180 = vsel %vm95, %v179, %v155
    %v181 = vsel %vm94, %v91, %v178
    %v182 = vsel %vm94, 0, %v180
    %v183 = vcosq.f32.pop %v181
    %v184 = vsinq.f32.pop %v181
    %vm185 = vweird.f32 %v91
    %v186 = vadd.s32 %v182, 3
    %v187 = vand.u32 %v186, 3
    %vm188 = vcmp.lt.s32.totalorder %v187, 2
    %vm189 = vcmp.eq.s32.totalorder %v187, 0
    %v190 = vxor.u32 %v184, 2147483648
    %v191 = vsel %vm189, %v183, %v190
    %vm192 = vcmp.eq.s32.totalorder %v187, 2
    %v193 = vxor.u32 %v183, 2147483648
    %v194 = vsel %vm192, %v193, %v184
    %v195 = vsel %vm188, %v191, %v194
    %v196 = vsel %vm185, nan, %v195
    %v197 = vand.u32 2147483647, %v92
    %vm198 = vcmp.le.f32.partialorder %v197, 0.7853982
    %vm199 = vcmp.lt.s32.totalorder %v92, 0
    %v200 = vand.u32 %v92, 2139095040
    %v201 = vshrl.u32 %v200, 23
    %v202 = vsub.s32 %v201, 127
    %v203 = vand.u32 2147483647, %v92
    %v204 = vand.u32 %v203, 8388607
    %v205 = vor.u32 %v204, 8388608
    %v206 = vsub.s32 0, %v205
    %v207 = vadd.s32 %v202, 1
    %vm208 = vcmp.gt.s32.totalorder %v207, 0
    %v209 = vsel %vm208, %v207, 0
    %v210 = vshrl.u32 %v209, 5
    %v211 = vand.u32 %v209, 31
    %v212 = vsub.s32 32, %v211
    %v213 = vshrl.u32 683565275, %v212
    %v214 = vshll.u32 683565275, %v211
    %v215 = vshrl.u32 2475754826, %v212
    %v216 = vor.u32 %v214, %v215
    %v217 = vshll.u32 2475754826, %v211
    %v218 = vshrl.u32 2131351028, %v212
    %v219 = vor.u32 %v217, %v218
    %v220 = vshll.u32 2131351028, %v211
    %v221 = vshrl.u32 2102212464, %v212
    %v222 = vor.u32 %v220, %v221
    %v223 = vshll.u32 2102212464, %v211
    %v224 = vshrl.u32 920167782, %v212
    %v225 = vor.u32 %v223, %v224
    %v226 = vshll.u32 920167782, %v211
    %v227 = vshrl.u32 1326507024, %v212
    %v228 = vor.u32 %v226, %v227
    %vm229 = vcmp.lt.s32.totalorder %v210, 1
    %vm230 = vcmp.lt.s32.totalorder %v210, 2
    %vm231 = vcmp.lt.s32.totalorder %v210, 3
    %vm232 = vcmp.lt.s32.totalorder %v210, 4
    %v233 = vsel %vm229, %v213, %v216
    %v234 = vsel %vm232, %v222, 2102212464
    %v235 = vsel %vm231, %v219, %v234
    %v236 = vsel %vm230, %v233, %v235
    %v237 = vsel %vm229, %v216, %v219
    %v238 = vsel %vm232, %v225, 920167782
    %v239 = vsel %vm231, %v222, %v238
    %v240 = vsel %vm230, %v237, %v239
    %v241 = vsel %vm229, %v219, %v222
    %v242 = vsel %vm232, %v228, 1326507024
    %v243 = vsel %vm231, %v225, %v242
    %v244 = vsel %vm230, %v241, %v243
    %v245 = vshll.u32 %v205, 8
    %v246 = vmul.u32.u64.compose %v245, %v244
    %v247 = vextract.low.u32 %v246
    %v248 = vextract.high.u32 %v246
    %v249 = vmul.u32.u64.compose %v245, %v240
    %v250 = vextract.low.u32 %v249
    %v251 = vextract.high.u32 %v249
    %v252 = vmul.u32 %v245, %v236
    %v253 = vadd.s32 %v248, %v250
    %vm254 = vc.u32 %v248, %v250
    %v255 = vadd.s32 %v251, 1
    %v256 = vsel %vm254, %v255, %v251
    %v257 = vadd.s32 %v252, %v256
    %v258 = vadd.s32 %v257, 536870912
    %v259 = vshrl.u32 %v258, 30
    %v260 = vshll.u32 %v259, 30
    %v261 = vsub.s32 %v257, %v260
    %vm262 = vcmp.lt.s32.totalorder %v261, 0
    %v263 = vsub.s32 0, %v261
    %v264 = vsel %vm262, %v263, %v261
    %v265 = vclz %v264
    %v266 = vsub.s32 %v265, 2
    %vm267 = vcmp.gt.s32.totalorder 0, %v266
    %v268 = vsel %vm267, 0, %v266
    %v269 = vsub.s32 32, %v268
    %v270 = vshll.u32 %v261, %v268
    %v271 = vshrl.u32 %v253, %v269
    %v272 = vor.u32 %v270, %v271
    %v273 = vsub.s32 4294967266, %v268
    %v274 = vadd.s32 %v273, 127
    %v275 = vshll.u32 %v274, 23
    %v276 = vor.u32 4788187, %v275
    %v277 = vand.u32 2147483647, %v276
    %v279 = vcvt.s32.f32 %v272
    %v280 = vmul.f32 %v279, %v277
    %v281 = vxor.u32 %v280, 2147483648
    %v282 = vsel %vm199, %v281, %v280
    %v283 = vsub.s32 4, %v259
    %v284 = vsel %vm199, %v283, %v259
    %v285 = vsel %vm198, %v92, %v282
    %v286 = vsel %vm198, 0, %v284
    %v287 = vcosq.f32.pop %v285
    %v288 = vsinq.f32.pop %v285
    %vm289 = vweird.f32 %v92
    %v290 = vadd.s32 %v286, 3
    %v291 = vand.u32 %v290, 3
    %vm292 = vcmp.lt.s32.totalorder %v291, 2
    %vm293 = vcmp.eq.s32.totalorder %v291, 0
    %v294 = vxor.u32 %v288, 2147483648
    %v295 = vsel %vm293, %v287, %v294
    %vm296 = vcmp.eq.s32.totalorder %v291, 2
    %v297 = vxor.u32 %v287, 2147483648
    %v298 = vsel %vm296, %v297, %v288
    %v299 = vsel %vm292, %v295, %v298
    %v300 = vsel %vm289, nan, %v299
    %v301 = vpack.c.bf16 %v300, %v196
    %v302 = vand.u32 2147483647, %v91
    %vm303 = vcmp.le.f32.partialorder %v302, 0.7853982
    %vm304 = vcmp.lt.s32.totalorder %v91, 0
    %v305 = vand.u32 %v91, 2139095040
    %v306 = vshrl.u32 %v305, 23
    %v307 = vsub.s32 %v306, 127
    %v308 = vand.u32 2147483647, %v91
    %v309 = vand.u32 %v308, 8388607
    %v310 = vor.u32 %v309, 8388608
    %v311 = vsub.s32 0, %v310
    %v312 = vadd.s32 %v307, 1
    %vm313 = vcmp.gt.s32.totalorder %v312, 0
    %v314 = vsel %vm313, %v312, 0
    %v315 = vshrl.u32 %v314, 5
    %v316 = vand.u32 %v314, 31
    %v317 = vsub.s32 32, %v316
    %v318 = vshrl.u32 683565275, %v317
    %v319 = vshll.u32 683565275, %v316
    %v320 = vshrl.u32 2475754826, %v317
    %v321 = vor.u32 %v319, %v320
    %v322 = vshll.u32 2475754826, %v316
    %v323 = vshrl.u32 2131351028, %v317
    %v324 = vor.u32 %v322, %v323
    %v325 = vshll.u32 2131351028, %v316
    %v326 = vshrl.u32 2102212464, %v317
    %v327 = vor.u32 %v325, %v326
    %v328 = vshll.u32 2102212464, %v316
    %v329 = vshrl.u32 920167782, %v317
    %v330 = vor.u32 %v328, %v329
    %v331 = vshll.u32 920167782, %v316
    %v332 = vshrl.u32 1326507024, %v317
    %v333 = vor.u32 %v331, %v332
    %vm334 = vcmp.lt.s32.totalorder %v315, 1
    %vm335 = vcmp.lt.s32.totalorder %v315, 2
    %vm336 = vcmp.lt.s32.totalorder %v315, 3
    %vm337 = vcmp.lt.s32.totalorder %v315, 4
    %v338 = vsel %vm334, %v318, %v321
    %v339 = vsel %vm337, %v327, 2102212464
    %v340 = vsel %vm336, %v324, %v339
    %v341 = vsel %vm335, %v338, %v340
    %v342 = vsel %vm334, %v321, %v324
    %v343 = vsel %vm337, %v330, 920167782
    %v344 = vsel %vm336, %v327, %v343
    %v345 = vsel %vm335, %v342, %v344
    %v346 = vsel %vm334, %v324, %v327
    %v347 = vsel %vm337, %v333, 1326507024
    %v348 = vsel %vm336, %v330, %v347
    %v349 = vsel %vm335, %v346, %v348
    %v350 = vshll.u32 %v310, 8
    %v351 = vmul.u32.u64.compose %v350, %v349
    %v352 = vextract.low.u32 %v351
    %v353 = vextract.high.u32 %v351
    %v354 = vmul.u32.u64.compose %v350, %v345
    %v355 = vextract.low.u32 %v354
    %v356 = vextract.high.u32 %v354
    %v357 = vmul.u32 %v350, %v341
    %v358 = vadd.s32 %v353, %v355
    %vm359 = vc.u32 %v353, %v355
    %v360 = vadd.s32 %v356, 1
    %v361 = vsel %vm359, %v360, %v356
    %v362 = vadd.s32 %v357, %v361
    %v363 = vadd.s32 %v362, 536870912
    %v364 = vshrl.u32 %v363, 30
    %v365 = vshll.u32 %v364, 30
    %v366 = vsub.s32 %v362, %v365
    %vm367 = vcmp.lt.s32.totalorder %v366, 0
    %v368 = vsub.s32 0, %v366
    %v369 = vsel %vm367, %v368, %v366
    %v370 = vclz %v369
    %v371 = vsub.s32 %v370, 2
    %vm372 = vcmp.gt.s32.totalorder 0, %v371
    %v373 = vsel %vm372, 0, %v371
    %v374 = vsub.s32 32, %v373
    %v375 = vshll.u32 %v366, %v373
    %v376 = vshrl.u32 %v358, %v374
    %v377 = vor.u32 %v375, %v376
    %v378 = vsub.s32 4294967266, %v373
    %v379 = vadd.s32 %v378, 127
    %v380 = vshll.u32 %v379, 23
    %v381 = vor.u32 4788187, %v380
    %v382 = vand.u32 2147483647, %v381
    %v384 = vcvt.s32.f32 %v377
    %v385 = vmul.f32 %v384, %v382
    %v386 = vxor.u32 %v385, 2147483648
    %v387 = vsel %vm304, %v386, %v385
    %v388 = vsub.s32 4, %v364
    %v389 = vsel %vm304, %v388, %v364
    %v390 = vsel %vm303, %v91, %v387
    %v391 = vsel %vm303, 0, %v389
    %v392 = vcosq.f32.pop %v390
    %v393 = vsinq.f32.pop %v390
    %vm394 = vweird.f32 %v91
    %v395 = vand.u32 %v391, 3
    %vm396 = vcmp.lt.s32.totalorder %v395, 2
    %vm397 = vcmp.eq.s32.totalorder %v395, 0
    %v398 = vxor.u32 %v393, 2147483648
    %v399 = vsel %vm397, %v392, %v398
    %vm400 = vcmp.eq.s32.totalorder %v395, 2
    %v401 = vxor.u32 %v392, 2147483648
    %v402 = vsel %vm400, %v401, %v393
    %v403 = vsel %vm396, %v399, %v402
    %v404 = vsel %vm394, nan, %v403
    %v405 = vand.u32 2147483647, %v92
    %vm406 = vcmp.le.f32.partialorder %v405, 0.7853982
    %vm407 = vcmp.lt.s32.totalorder %v92, 0
    %v408 = vand.u32 %v92, 2139095040
    %v409 = vshrl.u32 %v408, 23
    %v410 = vsub.s32 %v409, 127
    %v411 = vand.u32 2147483647, %v92
    %v412 = vand.u32 %v411, 8388607
    %v413 = vor.u32 %v412, 8388608
    %v414 = vsub.s32 0, %v413
    %v415 = vadd.s32 %v410, 1
    %vm416 = vcmp.gt.s32.totalorder %v415, 0
    %v417 = vsel %vm416, %v415, 0
    %v418 = vshrl.u32 %v417, 5
    %v419 = vand.u32 %v417, 31
    %v420 = vsub.s32 32, %v419
    %v421 = vshrl.u32 683565275, %v420
    %v422 = vshll.u32 683565275, %v419
    %v423 = vshrl.u32 2475754826, %v420
    %v424 = vor.u32 %v422, %v423
    %v425 = vshll.u32 2475754826, %v419
    %v426 = vshrl.u32 2131351028, %v420
    %v427 = vor.u32 %v425, %v426
    %v428 = vshll.u32 2131351028, %v419
    %v429 = vshrl.u32 2102212464, %v420
    %v430 = vor.u32 %v428, %v429
    %v431 = vshll.u32 2102212464, %v419
    %v432 = vshrl.u32 920167782, %v420
    %v433 = vor.u32 %v431, %v432
    %v434 = vshll.u32 920167782, %v419
    %v435 = vshrl.u32 1326507024, %v420
    %v436 = vor.u32 %v434, %v435
    %vm437 = vcmp.lt.s32.totalorder %v418, 1
    %vm438 = vcmp.lt.s32.totalorder %v418, 2
    %vm439 = vcmp.lt.s32.totalorder %v418, 3
    %vm440 = vcmp.lt.s32.totalorder %v418, 4
    %v441 = vsel %vm437, %v421, %v424
    %v442 = vsel %vm440, %v430, 2102212464
    %v443 = vsel %vm439, %v427, %v442
    %v444 = vsel %vm438, %v441, %v443
    %v445 = vsel %vm437, %v424, %v427
    %v446 = vsel %vm440, %v433, 920167782
    %v447 = vsel %vm439, %v430, %v446
    %v448 = vsel %vm438, %v445, %v447
    %v449 = vsel %vm437, %v427, %v430
    %v450 = vsel %vm440, %v436, 1326507024
    %v451 = vsel %vm439, %v433, %v450
    %v452 = vsel %vm438, %v449, %v451
    %v453 = vshll.u32 %v413, 8
    %v454 = vmul.u32.u64.compose %v453, %v452
    %v455 = vextract.low.u32 %v454
    %v456 = vextract.high.u32 %v454
    %v457 = vmul.u32.u64.compose %v453, %v448
    %v458 = vextract.low.u32 %v457
    %v459 = vextract.high.u32 %v457
    %v460 = vmul.u32 %v453, %v444
    %v461 = vadd.s32 %v456, %v458
    %vm462 = vc.u32 %v456, %v458
    %v463 = vadd.s32 %v459, 1
    %v464 = vsel %vm462, %v463, %v459
    %v465 = vadd.s32 %v460, %v464
    %v466 = vadd.s32 %v465, 536870912
    %v467 = vshrl.u32 %v466, 30
    %v468 = vshll.u32 %v467, 30
    %v469 = vsub.s32 %v465, %v468
    %vm470 = vcmp.lt.s32.totalorder %v469, 0
    %v471 = vsub.s32 0, %v469
    %v472 = vsel %vm470, %v471, %v469
    %v473 = vclz %v472
    %v474 = vsub.s32 %v473, 2
    %vm475 = vcmp.gt.s32.totalorder 0, %v474
    %v476 = vsel %vm475, 0, %v474
    %v477 = vsub.s32 32, %v476
    %v478 = vshll.u32 %v469, %v476
    %v479 = vshrl.u32 %v461, %v477
    %v480 = vor.u32 %v478, %v479
    %v481 = vsub.s32 4294967266, %v476
    %v482 = vadd.s32 %v481, 127
    %v483 = vshll.u32 %v482, 23
    %v484 = vor.u32 4788187, %v483
    %v485 = vand.u32 2147483647, %v484
    %v487 = vcvt.s32.f32 %v480
    %v488 = vmul.f32 %v487, %v485
    %v489 = vxor.u32 %v488, 2147483648
    %v490 = vsel %vm407, %v489, %v488
    %v491 = vsub.s32 4, %v467
    %v492 = vsel %vm407, %v491, %v467
    %v493 = vsel %vm406, %v92, %v490
    %v494 = vsel %vm406, 0, %v492
    %v495 = vcosq.f32.pop %v493
    %v496 = vsinq.f32.pop %v493
    %vm497 = vweird.f32 %v92
    %v498 = vand.u32 %v494, 3
    %vm499 = vcmp.lt.s32.totalorder %v498, 2
    %vm500 = vcmp.eq.s32.totalorder %v498, 0
    %v501 = vxor.u32 %v496, 2147483648
    %v502 = vsel %vm500, %v495, %v501
    %vm503 = vcmp.eq.s32.totalorder %v498, 2
    %v504 = vxor.u32 %v495, 2147483648
    %v505 = vsel %vm503, %v504, %v496
    %v506 = vsel %vm499, %v502, %v505
    %v507 = vsel %vm497, nan, %v506
    %v508 = vpack.c.bf16 %v507, %v404
    %v509 = vld [vmem:[#allocation6] ss:$0 sm:$0xff]
    %v510 = vld [vmem:[#allocation6 + $0x1] ss:$0 sm:$0xff]
    %s511 = scalar_lea.vmem [#allocation6], 2
    %v512 = vld [vmem:[%s511] ss:$8 sm:$0x3]
    %s513 = scalar_lea.vmem [#allocation6], 3
    %v514 = vld [vmem:[%s513] ss:$8 sm:$0x3]
    %v515 = vld [vmem:[#allocation6 + $0x4] ss:$0 sm:$0xff]
    %s516 = scalar_lea.vmem [#allocation6], 5
    %v517 = vld [vmem:[%s516] ss:$8 sm:$0x3]
    %v518 = vld [vmem:[%s3] sm:$0xf]
    %v519 = vld [vmem:[%s3 + $0x4] sm:$0xf]
    %v520 = vld [vmem:[%s3 + $0x8] sm:$0xf]
    %v521 = vld [vmem:[%s3 + $0xc] sm:$0xf]
    %s522 = scalar_lea.vmem %s3, 16
    %v523 = vld [vmem:[%s522] sm:$0xf]
    %v524 = vld [vmem:[%s522 + $0x4] sm:$0xf]
    %v525 = vld [vmem:[%s522 + $0x8] sm:$0xf]
    %v526 = vld [vmem:[%s522 + $0xc] sm:$0xf]
    %v531 = vunpack.c.l.b16 %v523
    %v532 = vunpack.c.l.b16 %v524
    %v533 = vunpack.c.l.b16 %v525
    %v534 = vunpack.c.l.b16 %v526
    %v535 = vpack.c.b16 %v532, %v531
    %v536 = vpack.c.b16 %v534, %v533
    %vm539 = vcmask 261120
    %v541 = vsel %vm539, %v508, 0
    %543 = vmatprep.subr.bf16.mxu0 0
    %544 = vmatpush1.bf16.msra.mxu0 0
    %545 = vmatprep.subr.bf16.mxu0 0
    %546 = vmatpush1.bf16.msra.mxu0 0
    %547 = vmatprep.subr.bf16.mxu0 0
    %548 = vmatpush1.bf16.msra.mxu0 0
    %549 = vmatprep.subr.bf16.mxu0 0
    %550 = vmatpush1.bf16.msra.mxu0 0
    %551 = vmatprep.subr.bf16.mxu0 0
    %552 = vmatpush1.bf16.msra.mxu0 0
    %553 = vmatprep.subr.bf16.mxu0 0
    %554 = vmatpush1.bf16.msra.mxu0 0
    %555 = vmatprep.subr.bf16.mxu0 0
    %556 = vmatpush1.bf16.msra.mxu0 %v536
    %557 = vmatprep.subr.bf16.mxu0 0
    %558 = vmatpush1.bf16.msra.mxu0 %v535
    %559 = vmatprep.subr.bf16.mxu0 0
    %560 = vmatpush2.bf16.msra.mxu0 0
    %561 = vmatprep.subr.bf16.mxu0 0
    %562 = vmatpush2.bf16.msra.mxu0 0
    %563 = vmatprep.subr.bf16.mxu0 0
    %564 = vmatpush2.bf16.msra.mxu0 0
    %565 = vmatprep.subr.bf16.mxu0 0
    %566 = vmatpush2.bf16.msra.mxu0 0
    %567 = vmatprep.subr.bf16.mxu0 0
    %568 = vmatpush2.bf16.msra.mxu0 0
    %569 = vmatprep.subr.bf16.mxu0 0
    %570 = vmatpush2.bf16.msra.mxu0 0
    %571 = vmatprep.subr.bf16.mxu0 0
    %572 = vmatpush2.bf16.msra.mxu0 0
    %573 = vmatprep.subr.bf16.mxu0 0
    %574 = vmatpush2.bf16.msra.mxu0 0
    %575 = vmatprep.mubr.bf16.mxu0 0
    %576 = vmatmul.mubr.bf16.gmra.mxu0 %v541
    %v577 = vpop.f32.mrf.mxu0
    %v578 = vadd.f32 0.0, %v577
    %v579 = vpop.f32.mrf.mxu0
    %v580 = vpop.f32.mrf.mxu0
    %v581 = vadd.f32 0.0, %v580
    %v582 = vpop.f32.mrf.mxu0
    %583 = vdwg.mxu0
    %v588 = vunpack.c.l.b16 %v518
    %v589 = vunpack.c.l.b16 %v519
    %v590 = vunpack.c.l.b16 %v520
    %v591 = vunpack.c.l.b16 %v521
    %v592 = vpack.c.b16 %v589, %v588
    %v593 = vpack.c.b16 %v591, %v590
    %v597 = vsel %vm539, %v301, 0
    %599 = vmatprep.subr.bf16.mxu0 0
    %600 = vmatpush1.bf16.msra.mxu0 0
    %601 = vmatprep.subr.bf16.mxu0 0
    %602 = vmatpush1.bf16.msra.mxu0 0
    %603 = vmatprep.subr.bf16.mxu0 0
    %604 = vmatpush1.bf16.msra.mxu0 0
    %605 = vmatprep.subr.bf16.mxu0 0
    %606 = vmatpush1.bf16.msra.mxu0 0
    %607 = vmatprep.subr.bf16.mxu0 0
    %608 = vmatpush1.bf16.msra.mxu0 0
    %609 = vmatprep.subr.bf16.mxu0 0
    %610 = vmatpush1.bf16.msra.mxu0 0
    %611 = vmatprep.subr.bf16.mxu0 0
    %612 = vmatpush1.bf16.msra.mxu0 %v593
    %613 = vmatprep.subr.bf16.mxu0 0
    %614 = vmatpush1.bf16.msra.mxu0 %v592
    %615 = vmatprep.subr.bf16.mxu0 0
    %616 = vmatpush2.bf16.msra.mxu0 0
    %617 = vmatprep.subr.bf16.mxu0 0
    %618 = vmatpush2.bf16.msra.mxu0 0
    %619 = vmatprep.subr.bf16.mxu0 0
    %620 = vmatpush2.bf16.msra.mxu0 0
    %621 = vmatprep.subr.bf16.mxu0 0
    %622 = vmatpush2.bf16.msra.mxu0 0
    %623 = vmatprep.subr.bf16.mxu0 0
    %624 = vmatpush2.bf16.msra.mxu0 0
    %625 = vmatprep.subr.bf16.mxu0 0
    %626 = vmatpush2.bf16.msra.mxu0 0
    %627 = vmatprep.subr.bf16.mxu0 0
    %628 = vmatpush2.bf16.msra.mxu0 0
    %629 = vmatprep.subr.bf16.mxu0 0
    %630 = vmatpush2.bf16.msra.mxu0 0
    %631 = vmatprep.mubr.bf16.mxu0 0
    %632 = vmatmul.mubr.bf16.gmra.mxu0 %v597
    %v633 = vpop.f32.mrf.mxu0
    %v634 = vadd.f32 %v578, %v633
    %v635 = vpop.f32.mrf.mxu0
    %v636 = vpop.f32.mrf.mxu0
    %v637 = vadd.f32 %v581, %v636
    %v638 = vpop.f32.mrf.mxu0
    %639 = vdwg.mxu0
    %v640 = vadd.f32 %v634, %v509
    %v641 = vadd.f32 %v637, %v509
    %v642 = vmin.f32 %v640, 20.0
    %v643 = vmin.f32 %v641, 20.0
    %v644 = vmul.f32 %v642, 1.442695
    %v645 = vpow.pop %v644
    %v646 = vmul.f32 %v643, 1.442695
    %v647 = vpow.pop %v646
    %v648 = vadd.f32 %v645, 2.0
    %v649 = vadd.f32 %v647, 2.0
    %v650 = vmul.f32 %v645, %v648
    %v651 = vmul.f32 %v647, %v649
    %v652 = vmul.f32 %v640, %v650
    %v653 = vmul.f32 %v641, %v651
    %v654 = vadd.f32 %v650, 2.0
    %v655 = vadd.f32 %v651, 2.0
    %v656 = vrcp.pop %v654
    %v657 = vmul.f32 %v652, %v656
    %v658 = vrcp.pop %v655
    %v659 = vmul.f32 %v653, %v658
    %vm660 = vcmp.gt.f32.partialorder %v640, 20.0
    %vm661 = vcmp.gt.f32.partialorder %v641, 20.0
    %v662 = vsel %vm660, %v640, %v657
    %v663 = vsel %vm661, %v641, %v659
    %v664 = vpack.c.bf16 %v663, %v662
    %v665 = vld [vmem:[%s4] sm:$0xf]
    %v666 = vld [vmem:[%s4 + $0x4] sm:$0xf]
    %v667 = vld [vmem:[%s4 + $0x8] sm:$0xf]
    %v668 = vld [vmem:[%s4 + $0xc] sm:$0xf]
    %v669 = vld [vmem:[%s4 + $0x10] sm:$0xf]
    %v670 = vld [vmem:[%s4 + $0x14] sm:$0xf]
    %v671 = vld [vmem:[%s4 + $0x18] sm:$0xf]
    %v672 = vld [vmem:[%s4 + $0x1c] sm:$0xf]
    %v673 = vld [vmem:[%s4 + $0x20] sm:$0xf]
    %v674 = vld [vmem:[%s4 + $0x24] sm:$0xf]
    %v675 = vld [vmem:[%s4 + $0x28] sm:$0xf]
    %v676 = vld [vmem:[%s4 + $0x2c] sm:$0xf]
    %v677 = vld [vmem:[%s4 + $0x30] sm:$0xf]
    %v678 = vld [vmem:[%s4 + $0x34] sm:$0xf]
    %v679 = vld [vmem:[%s4 + $0x38] sm:$0xf]
    %v680 = vld [vmem:[%s4 + $0x3c] sm:$0xf]
    %v697 = vunpack.c.l.b16 %v665
    %v698 = vunpack.c.l.b16 %v666
    %v699 = vunpack.c.l.b16 %v667
    %v700 = vunpack.c.l.b16 %v668
    %v701 = vunpack.c.l.b16 %v669
    %v702 = vunpack.c.l.b16 %v670
    %v703 = vunpack.c.l.b16 %v671
    %v704 = vunpack.c.l.b16 %v672
    %v705 = vunpack.c.l.b16 %v673
    %v706 = vunpack.c.l.b16 %v674
    %v707 = vunpack.c.l.b16 %v675
    %v708 = vunpack.c.l.b16 %v676
    %v709 = vunpack.c.l.b16 %v677
    %v710 = vunpack.c.l.b16 %v678
    %v711 = vunpack.c.l.b16 %v679
    %v712 = vunpack.c.l.b16 %v680
    %v713 = vpack.c.b16 %v698, %v697
    %v714 = vpack.c.b16 %v700, %v699
    %v715 = vpack.c.b16 %v702, %v701
    %v716 = vpack.c.b16 %v704, %v703
    %v717 = vpack.c.b16 %v706, %v705
    %v718 = vpack.c.b16 %v708, %v707
    %v719 = vpack.c.b16 %v710, %v709
    %v720 = vpack.c.b16 %v712, %v711
    %729 = vmatprep.subr.bf16.mxu0 0
    %730 = vmatpush1.bf16.msra.mxu0 %v720
    %731 = vmatprep.subr.bf16.mxu0 0
    %732 = vmatpush1.bf16.msra.mxu0 %v719
    %733 = vmatprep.subr.bf16.mxu0 0
    %734 = vmatpush1.bf16.msra.mxu0 %v718
    %735 = vmatprep.subr.bf16.mxu0 0
    %736 = vmatpush1.bf16.msra.mxu0 %v717
    %737 = vmatprep.subr.bf16.mxu0 0
    %738 = vmatpush1.bf16.msra.mxu0 %v716
    %739 = vmatprep.subr.bf16.mxu0 0
    %740 = vmatpush1.bf16.msra.mxu0 %v715
    %741 = vmatprep.subr.bf16.mxu0 0
    %742 = vmatpush1.bf16.msra.mxu0 %v714
    %743 = vmatprep.subr.bf16.mxu0 0
    %744 = vmatpush1.bf16.msra.mxu0 %v713
    %745 = vmatprep.subr.bf16.mxu0 0
    %746 = vmatpush2.bf16.msra.mxu0 0
    %747 = vmatprep.subr.bf16.mxu0 0
    %748 = vmatpush2.bf16.msra.mxu0 0
    %749 = vmatprep.subr.bf16.mxu0 0
    %750 = vmatpush2.bf16.msra.mxu0 0
    %751 = vmatprep.subr.bf16.mxu0 0
    %752 = vmatpush2.bf16.msra.mxu0 0
    %753 = vmatprep.subr.bf16.mxu0 0
    %754 = vmatpush2.bf16.msra.mxu0 0
    %755 = vmatprep.subr.bf16.mxu0 0
    %756 = vmatpush2.bf16.msra.mxu0 0
    %757 = vmatprep.subr.bf16.mxu0 0
    %758 = vmatpush2.bf16.msra.mxu0 0
    %759 = vmatprep.subr.bf16.mxu0 0
    %760 = vmatpush2.bf16.msra.mxu0 0
    %761 = vmatprep.mubr.bf16.mxu0 0
    %762 = vmatmul.mubr.bf16.gmra.mxu0 %v664
    %v763 = vpop.f32.mrf.mxu0
    %v764 = vadd.f32 %v510, %v763
    %v765 = vpop.f32.mrf.mxu0
    %v766 = vpop.f32.mrf.mxu0
    %v767 = vadd.f32 %v510, %v766
    %v768 = vpop.f32.mrf.mxu0
    %769 = vdwg.mxu0
    %v770 = vld [vmem:[%s1] sm:$0xff]
    %v771 = vld [vmem:[%s1 + $0x8] sm:$0xff]
    %v772 = vpack.c.bf16 %v771, %v770
    %v773 = vld [vmem:[#allocation2] sm:$0xff]
    %v774 = vld [vmem:[#allocation2 + $0x8] sm:$0xff]
    %v775 = vpack.c.bf16 %v767, %v764
    %v776 = vld [vmem:[%s6] sm:$0xff]
    %v777 = vld [vmem:[%s6 + $0x8] sm:$0xff]
    %v778 = vld [vmem:[%s6 + $0x10] sm:$0xff]
    %v779 = vld [vmem:[%s6 + $0x18] sm:$0xff]
    %v780 = vld [vmem:[%s6 + $0x20] sm:$0xff]
    %v781 = vld [vmem:[%s6 + $0x28] sm:$0xff]
    %v782 = vld [vmem:[%s6 + $0x30] sm:$0xff]
    %v783 = vld [vmem:[%s6 + $0x38] sm:$0xff]
    %v792 = vunpack.c.l.b16 %v776
    %v793 = vunpack.c.h.b16 %v776
    %v794 = vunpack.c.l.b16 %v777
    %v795 = vunpack.c.h.b16 %v777
    %v796 = vunpack.c.l.b16 %v778
    %v797 = vunpack.c.h.b16 %v778
    %v798 = vunpack.c.l.b16 %v779
    %v799 = vunpack.c.h.b16 %v779
    %v800 = vunpack.c.l.b16 %v780
    %v801 = vunpack.c.h.b16 %v780
    %v802 = vunpack.c.l.b16 %v781
    %v803 = vunpack.c.h.b16 %v781
    %v804 = vunpack.c.l.b16 %v782
    %v805 = vunpack.c.h.b16 %v782
    %v806 = vunpack.c.l.b16 %v783
    %v807 = vunpack.c.h.b16 %v783
    %v808 = vpack.c.b16 %v794, %v792
    %v809 = vpack.c.b16 %v795, %v793
    %v810 = vpack.c.b16 %v798, %v796
    %v811 = vpack.c.b16 %v799, %v797
    %v812 = vpack.c.b16 %v802, %v800
    %v813 = vpack.c.b16 %v803, %v801
    %v814 = vpack.c.b16 %v806, %v804
    %v815 = vpack.c.b16 %v807, %v805
    %vm824 = vcmask 523264
    %v826 = vsel %vm824, %v775, 0
    %828 = vmatprep.subr.bf16.mxu0 0
    %829 = vmatpush1.bf16.msra.mxu0 0
    %830 = vmatprep.subr.bf16.mxu0 0
    %831 = vmatpush1.bf16.msra.mxu0 0
    %832 = vmatprep.subr.bf16.mxu0 0
    %833 = vmatpush1.bf16.msra.mxu0 0
    %834 = vmatprep.subr.bf16.mxu0 0
    %835 = vmatpush1.bf16.msra.mxu0 0
    %836 = vmatprep.subr.bf16.mxu0 %v815
    %837 = vmatpush1.bf16.msra.mxu0 %v814
    %838 = vmatprep.subr.bf16.mxu0 %v813
    %839 = vmatpush1.bf16.msra.mxu0 %v812
    %840 = vmatprep.subr.bf16.mxu0 %v811
    %841 = vmatpush1.bf16.msra.mxu0 %v810
    %842 = vmatprep.subr.bf16.mxu0 %v809
    %843 = vmatpush1.bf16.msra.mxu0 %v808
    %844 = vmatprep.subr.bf16.mxu0 0
    %845 = vmatpush2.bf16.msra.mxu0 0
    %846 = vmatprep.subr.bf16.mxu0 0
    %847 = vmatpush2.bf16.msra.mxu0 0
    %848 = vmatprep.subr.bf16.mxu0 0
    %849 = vmatpush2.bf16.msra.mxu0 0
    %850 = vmatprep.subr.bf16.mxu0 0
    %851 = vmatpush2.bf16.msra.mxu0 0
    %852 = vmatprep.subr.bf16.mxu0 0
    %853 = vmatpush2.bf16.msra.mxu0 0
    %854 = vmatprep.subr.bf16.mxu0 0
    %855 = vmatpush2.bf16.msra.mxu0 0
    %856 = vmatprep.subr.bf16.mxu0 0
    %857 = vmatpush2.bf16.msra.mxu0 0
    %858 = vmatprep.subr.bf16.mxu0 0
    %859 = vmatpush2.bf16.msra.mxu0 0
    %860 = vmatprep.mubr.bf16.mxu0 0
    %861 = vmatmul.mubr.bf16.gmra.mxu0 %v826
    %v862 = vpop.f32.mrf.mxu0
    %v863 = vadd.f32 0.0, %v862
    %v864 = vpop.f32.mrf.mxu0
    %v865 = vadd.f32 0.0, %v864
    %v866 = vpop.f32.mrf.mxu0
    %v867 = vadd.f32 0.0, %v866
    %v868 = vpop.f32.mrf.mxu0
    %v869 = vadd.f32 0.0, %v868
    %870 = vdwg.mxu0
    %v873 = vunpack.c.l.b16 %v773
    %v874 = vunpack.c.h.b16 %v773
    %v875 = vunpack.c.l.b16 %v774
    %v876 = vunpack.c.h.b16 %v774
    %v877 = vpack.c.b16 %v875, %v873
    %v878 = vpack.c.b16 %v876, %v874
    %vm881 = vcmask 130048
    %v883 = vsel %vm881, %v772, 0
    %885 = vmatprep.subr.bf16.mxu0 0
    %886 = vmatpush1.bf16.msra.mxu0 0
    %887 = vmatprep.subr.bf16.mxu0 0
    %888 = vmatpush1.bf16.msra.mxu0 0
    %889 = vmatprep.subr.bf16.mxu0 0
    %890 = vmatpush1.bf16.msra.mxu0 0
    %891 = vmatprep.subr.bf16.mxu0 0
    %892 = vmatpush1.bf16.msra.mxu0 0
    %893 = vmatprep.subr.bf16.mxu0 0
    %894 = vmatpush1.bf16.msra.mxu0 0
    %895 = vmatprep.subr.bf16.mxu0 0
    %896 = vmatpush1.bf16.msra.mxu0 0
    %897 = vmatprep.subr.bf16.mxu0 0
    %898 = vmatpush1.bf16.msra.mxu0 0
    %899 = vmatprep.subr.bf16.mxu0 %v878
    %900 = vmatpush1.bf16.msra.mxu0 %v877
    %901 = vmatprep.subr.bf16.mxu0 0
    %902 = vmatpush2.bf16.msra.mxu0 0
    %903 = vmatprep.subr.bf16.mxu0 0
    %904 = vmatpush2.bf16.msra.mxu0 0
    %905 = vmatprep.subr.bf16.mxu0 0
    %906 = vmatpush2.bf16.msra.mxu0 0
    %907 = vmatprep.subr.bf16.mxu0 0
    %908 = vmatpush2.bf16.msra.mxu0 0
    %909 = vmatprep.subr.bf16.mxu0 0
    %910 = vmatpush2.bf16.msra.mxu0 0
    %911 = vmatprep.subr.bf16.mxu0 0
    %912 = vmatpush2.bf16.msra.mxu0 0
    %913 = vmatprep.subr.bf16.mxu0 0
    %914 = vmatpush2.bf16.msra.mxu0 0
    %915 = vmatprep.subr.bf16.mxu0 0
    %916 = vmatpush2.bf16.msra.mxu0 0
    %917 = vmatprep.mubr.bf16.mxu0 0
    %918 = vmatmul.mubr.bf16.gmra.mxu0 %v883
    %v919 = vpop.f32.mrf.mxu0
    %v920 = vadd.f32 %v863, %v919
    %v921 = vpop.f32.mrf.mxu0
    %v922 = vadd.f32 %v865, %v921
    %v923 = vpop.f32.mrf.mxu0
    %v924 = vadd.f32 %v867, %v923
    %v925 = vpop.f32.mrf.mxu0
    %v926 = vadd.f32 %v869, %v925
    %927 = vdwg.mxu0
    %v929 = vlaneseq
    %v930 = vshrl.u32 %v929, 7
    %v931 = vsub.s32 0, %v930
    %v932 = vrot.slane %v512, %v931
    %v933 = vlaneseq
    %v934 = vshrl.u32 %v933, 7
    %v935 = vsub.s32 1, %v934
    %v936 = vrot.slane %v512, %v935
    %v939 = vadd.f32 %v920, %v932
    %v940 = vadd.f32 %v922, %v936
    %v941 = vadd.f32 %v924, %v932
    %v942 = vadd.f32 %v926, %v936
    %v943 = vmin.f32 %v939, 20.0
    %v944 = vmin.f32 %v940, 20.0
    %v945 = vmin.f32 %v941, 20.0
    %v946 = vmin.f32 %v942, 20.0
    %v947 = vmul.f32 %v943, 1.442695
    %v948 = vpow.pop %v947
    %v949 = vmul.f32 %v944, 1.442695
    %v950 = vpow.pop %v949
    %v951 = vmul.f32 %v945, 1.442695
    %v952 = vpow.pop %v951
    %v953 = vmul.f32 %v946, 1.442695
    %v954 = vpow.pop %v953
    %v955 = vadd.f32 %v948, 2.0
    %v956 = vadd.f32 %v950, 2.0
    %v957 = vadd.f32 %v952, 2.0
    %v958 = vadd.f32 %v954, 2.0
    %v959 = vmul.f32 %v948, %v955
    %v960 = vmul.f32 %v950, %v956
    %v961 = vmul.f32 %v952, %v957
    %v962 = vmul.f32 %v954, %v958
    %v963 = vmul.f32 %v939, %v959
    %v964 = vmul.f32 %v940, %v960
    %v965 = vmul.f32 %v941, %v961
    %v966 = vmul.f32 %v942, %v962
    %v967 = vadd.f32 %v959, 2.0
    %v968 = vadd.f32 %v960, 2.0
    %v969 = vadd.f32 %v961, 2.0
    %v970 = vadd.f32 %v962, 2.0
    %v971 = vrcp.pop %v967
    %v972 = vmul.f32 %v963, %v971
    %v973 = vrcp.pop %v968
    %v974 = vmul.f32 %v964, %v973
    %v975 = vrcp.pop %v969
    %v976 = vmul.f32 %v965, %v975
    %v977 = vrcp.pop %v970
    %v978 = vmul.f32 %v966, %v977
    %vm979 = vcmp.gt.f32.partialorder %v939, 20.0
    %vm980 = vcmp.gt.f32.partialorder %v940, 20.0
    %vm981 = vcmp.gt.f32.partialorder %v941, 20.0
    %vm982 = vcmp.gt.f32.partialorder %v942, 20.0
    %v983 = vsel %vm979, %v939, %v972
    %v984 = vsel %vm980, %v940, %v974
    %v985 = vsel %vm981, %v941, %v976
    %v986 = vsel %vm982, %v942, %v978
    %v987 = vpack.c.bf16 %v985, %v983
    %v988 = vpack.c.bf16 %v986, %v984
    %v989 = vld [vmem:[#allocation4] sm:$0xff]
    %v990 = vld [vmem:[#allocation4 + $0x8] sm:$0xff]
    %v991 = vld [vmem:[#allocation4 + $0x10] sm:$0xff]
    %v992 = vld [vmem:[#allocation4 + $0x18] sm:$0xff]
    %v993 = vld [vmem:[#allocation4 + $0x20] sm:$0xff]
    %v994 = vld [vmem:[#allocation4 + $0x28] sm:$0xff]
    %v995 = vld [vmem:[#allocation4 + $0x30] sm:$0xff]
    %v996 = vld [vmem:[#allocation4 + $0x38] sm:$0xff]
    %v997 = vld [vmem:[#allocation4 + $0x40] sm:$0xff]
    %v998 = vld [vmem:[#allocation4 + $0x48] sm:$0xff]
    %v999 = vld [vmem:[#allocation4 + $0x50] sm:$0xff]
    %v1000 = vld [vmem:[#allocation4 + $0x58] sm:$0xff]
    %v1001 = vld [vmem:[#allocation4 + $0x60] sm:$0xff]
    %v1002 = vld [vmem:[#allocation4 + $0x68] sm:$0xff]
    %v1003 = vld [vmem:[#allocation4 + $0x70] sm:$0xff]
    %v1004 = vld [vmem:[#allocation4 + $0x78] sm:$0xff]
    %v1005 = vld [vmem:[#allocation4 + $0x80] sm:$0xff]
    %v1006 = vld [vmem:[#allocation4 + $0x88] sm:$0xff]
    %v1007 = vld [vmem:[#allocation4 + $0x90] sm:$0xff]
    %v1008 = vld [vmem:[#allocation4 + $0x98] sm:$0xff]
    %v1009 = vld [vmem:[#allocation4 + $0xa0] sm:$0xff]
    %v1010 = vld [vmem:[#allocation4 + $0xa8] sm:$0xff]
    %v1011 = vld [vmem:[#allocation4 + $0xb0] sm:$0xff]
    %v1012 = vld [vmem:[#allocation4 + $0xb8] sm:$0xff]
    %v1013 = vld [vmem:[#allocation4 + $0xc0] sm:$0xff]
    %v1014 = vld [vmem:[#allocation4 + $0xc8] sm:$0xff]
    %v1015 = vld [vmem:[#allocation4 + $0xd0] sm:$0xff]
    %v1016 = vld [vmem:[#allocation4 + $0xd8] sm:$0xff]
    %v1017 = vld [vmem:[#allocation4 + $0xe0] sm:$0xff]
    %v1018 = vld [vmem:[#allocation4 + $0xe8] sm:$0xff]
    %v1019 = vld [vmem:[#allocation4 + $0xf0] sm:$0xff]
    %v1020 = vld [vmem:[#allocation4 + $0xf8] sm:$0xff]
    %v1022 = vlaneseq
    %v1023 = vshrl.u32 %v1022, 7
    %v1024 = vsub.s32 0, %v1023
    %v1025 = vrot.slane %v514, %v1024
    %v1026 = vlaneseq
    %v1027 = vshrl.u32 %v1026, 7
    %v1028 = vsub.s32 1, %v1027
    %v1029 = vrot.slane %v514, %v1028
    %v1064 = vunpack.c.l.b16 %v989
    %v1065 = vunpack.c.h.b16 %v989
    %v1066 = vunpack.c.l.b16 %v990
    %v1067 = vunpack.c.h.b16 %v990
    %v1068 = vunpack.c.l.b16 %v991
    %v1069 = vunpack.c.h.b16 %v991
    %v1070 = vunpack.c.l.b16 %v992
    %v1071 = vunpack.c.h.b16 %v992
    %v1072 = vunpack.c.l.b16 %v993
    %v1073 = vunpack.c.h.b16 %v993
    %v1074 = vunpack.c.l.b16 %v994
    %v1075 = vunpack.c.h.b16 %v994
    %v1076 = vunpack.c.l.b16 %v995
    %v1077 = vunpack.c.h.b16 %v995
    %v1078 = vunpack.c.l.b16 %v996
    %v1079 = vunpack.c.h.b16 %v996
    %v1080 = vunpack.c.l.b16 %v997
    %v1081 = vunpack.c.h.b16 %v997
    %v1082 = vunpack.c.l.b16 %v998
    %v1083 = vunpack.c.h.b16 %v998
    %v1084 = vunpack.c.l.b16 %v999
    %v1085 = vunpack.c.h.b16 %v999
    %v1086 = vunpack.c.l.b16 %v1000
    %v1087 = vunpack.c.h.b16 %v1000
    %v1088 = vunpack.c.l.b16 %v1001
    %v1089 = vunpack.c.h.b16 %v1001
    %v1090 = vunpack.c.l.b16 %v1002
    %v1091 = vunpack.c.h.b16 %v1002
    %v1092 = vunpack.c.l.b16 %v1003
    %v1093 = vunpack.c.h.b16 %v1003
    %v1094 = vunpack.c.l.b16 %v1004
    %v1095 = vunpack.c.h.b16 %v1004
    %v1096 = vunpack.c.l.b16 %v1005
    %v1097 = vunpack.c.h.b16 %v1005
    %v1098 = vunpack.c.l.b16 %v1006
    %v1099 = vunpack.c.h.b16 %v1006
    %v1100 = vunpack.c.l.b16 %v1007
    %v1101 = vunpack.c.h.b16 %v1007
    %v1102 = vunpack.c.l.b16 %v1008
    %v1103 = vunpack.c.h.b16 %v1008
    %v1104 = vunpack.c.l.b16 %v1009
    %v1105 = vunpack.c.h.b16 %v1009
    %v1106 = vunpack.c.l.b16 %v1010
    %v1107 = vunpack.c.h.b16 %v1010
    %v1108 = vunpack.c.l.b16 %v1011
    %v1109 = vunpack.c.h.b16 %v1011
    %v1110 = vunpack.c.l.b16 %v1012
    %v1111 = vunpack.c.h.b16 %v1012
    %v1112 = vunpack.c.l.b16 %v1013
    %v1113 = vunpack.c.h.b16 %v1013
    %v1114 = vunpack.c.l.b16 %v1014
    %v1115 = vunpack.c.h.b16 %v1014
    %v1116 = vunpack.c.l.b16 %v1015
    %v1117 = vunpack.c.h.b16 %v1015
    %v1118 = vunpack.c.l.b16 %v1016
    %v1119 = vunpack.c.h.b16 %v1016
    %v1120 = vunpack.c.l.b16 %v1017
    %v1121 = vunpack.c.h.b16 %v1017
    %v1122 = vunpack.c.l.b16 %v1018
    %v1123 = vunpack.c.h.b16 %v1018
    %v1124 = vunpack.c.l.b16 %v1019
    %v1125 = vunpack.c.h.b16 %v1019
    %v1126 = vunpack.c.l.b16 %v1020
    %v1127 = vunpack.c.h.b16 %v1020
    %v1128 = vpack.c.b16 %v1066, %v1064
    %v1129 = vpack.c.b16 %v1067, %v1065
    %v1130 = vpack.c.b16 %v1070, %v1068
    %v1131 = vpack.c.b16 %v1071, %v1069
    %v1132 = vpack.c.b16 %v1074, %v1072
    %v1133 = vpack.c.b16 %v1075, %v1073
    %v1134 = vpack.c.b16 %v1078, %v1076
    %v1135 = vpack.c.b16 %v1079, %v1077
    %v1136 = vpack.c.b16 %v1082, %v1080
    %v1137 = vpack.c.b16 %v1083, %v1081
    %v1138 = vpack.c.b16 %v1086, %v1084
    %v1139 = vpack.c.b16 %v1087, %v1085
    %v1140 = vpack.c.b16 %v1090, %v1088
    %v1141 = vpack.c.b16 %v1091, %v1089
    %v1142 = vpack.c.b16 %v1094, %v1092
    %v1143 = vpack.c.b16 %v1095, %v1093
    %v1144 = vpack.c.b16 %v1098, %v1096
    %v1145 = vpack.c.b16 %v1099, %v1097
    %v1146 = vpack.c.b16 %v1102, %v1100
    %v1147 = vpack.c.b16 %v1103, %v1101
    %v1148 = vpack.c.b16 %v1106, %v1104
    %v1149 = vpack.c.b16 %v1107, %v1105
    %v1150 = vpack.c.b16 %v1110, %v1108
    %v1151 = vpack.c.b16 %v1111, %v1109
    %v1152 = vpack.c.b16 %v1114, %v1112
    %v1153 = vpack.c.b16 %v1115, %v1113
    %v1154 = vpack.c.b16 %v1118, %v1116
    %v1155 = vpack.c.b16 %v1119, %v1117
    %v1156 = vpack.c.b16 %v1122, %v1120
    %v1157 = vpack.c.b16 %v1123, %v1121
    %v1158 = vpack.c.b16 %v1126, %v1124
    %v1159 = vpack.c.b16 %v1127, %v1125
    %1192 = vmatprep.subr.bf16.mxu0 %v1143
    %1193 = vmatpush1.bf16.msra.mxu0 %v1142
    %1194 = vmatprep.subr.bf16.mxu0 %v1141
    %1195 = vmatpush1.bf16.msra.mxu0 %v1140
    %1196 = vmatprep.subr.bf16.mxu0 %v1139
    %1197 = vmatpush1.bf16.msra.mxu0 %v1138
    %1198 = vmatprep.subr.bf16.mxu0 %v1137
    %1199 = vmatpush1.bf16.msra.mxu0 %v1136
    %1200 = vmatprep.subr.bf16.mxu0 %v1135
    %1201 = vmatpush1.bf16.msra.mxu0 %v1134
    %1202 = vmatprep.subr.bf16.mxu0 %v1133
    %1203 = vmatpush1.bf16.msra.mxu0 %v1132
    %1204 = vmatprep.subr.bf16.mxu0 %v1131
    %1205 = vmatpush1.bf16.msra.mxu0 %v1130
    %1206 = vmatprep.subr.bf16.mxu0 %v1129
    %1207 = vmatpush1.bf16.msra.mxu0 %v1128
    %1208 = vmatprep.subr.bf16.mxu0 %v1159
    %1209 = vmatpush2.bf16.msra.mxu0 %v1158
    %1210 = vmatprep.subr.bf16.mxu0 %v1157
    %1211 = vmatpush2.bf16.msra.mxu0 %v1156
    %1212 = vmatprep.subr.bf16.mxu0 %v1155
    %1213 = vmatpush2.bf16.msra.mxu0 %v1154
    %1214 = vmatprep.subr.bf16.mxu0 %v1153
    %1215 = vmatpush2.bf16.msra.mxu0 %v1152
    %1216 = vmatprep.subr.bf16.mxu0 %v1151
    %1217 = vmatpush2.bf16.msra.mxu0 %v1150
    %1218 = vmatprep.subr.bf16.mxu0 %v1149
    %1219 = vmatpush2.bf16.msra.mxu0 %v1148
    %1220 = vmatprep.subr.bf16.mxu0 %v1147
    %1221 = vmatpush2.bf16.msra.mxu0 %v1146
    %1222 = vmatprep.subr.bf16.mxu0 %v1145
    %1223 = vmatpush2.bf16.msra.mxu0 %v1144
    %1224 = vmatprep.mubr.bf16.mxu0 %v988
    %1225 = vmatmul.mubr.bf16.gmra.mxu0 %v987
    %v1226 = vpop.f32.mrf.mxu0
    %v1227 = vadd.f32 %v1025, %v1226
    %v1228 = vpop.f32.mrf.mxu0
    %v1229 = vadd.f32 %v1029, %v1228
    %v1230 = vpop.f32.mrf.mxu0
    %v1231 = vadd.f32 %v1025, %v1230
    %v1232 = vpop.f32.mrf.mxu0
    %v1233 = vadd.f32 %v1029, %v1232
    %1234 = vdwg.mxu0
    %v1235 = vmin.f32 %v1227, 20.0
    %v1236 = vmin.f32 %v1229, 20.0
    %v1237 = vmin.f32 %v1231, 20.0
    %v1238 = vmin.f32 %v1233, 20.0
    %v1239 = vmul.f32 %v1235, 1.442695
    %v1240 = vpow.pop %v1239
    %v1241 = vmul.f32 %v1236, 1.442695
    %v1242 = vpow.pop %v1241
    %v1243 = vmul.f32 %v1237, 1.442695
    %v1244 = vpow.pop %v1243
    %v1245 = vmul.f32 %v1238, 1.442695
    %v1246 = vpow.pop %v1245
    %v1247 = vadd.f32 %v1240, 2.0
    %v1248 = vadd.f32 %v1242, 2.0
    %v1249 = vadd.f32 %v1244, 2.0
    %v1250 = vadd.f32 %v1246, 2.0
    %v1251 = vmul.f32 %v1240, %v1247
    %v1252 = vmul.f32 %v1242, %v1248
    %v1253 = vmul.f32 %v1244, %v1249
    %v1254 = vmul.f32 %v1246, %v1250
    %v1255 = vmul.f32 %v1227, %v1251
    %v1256 = vmul.f32 %v1229, %v1252
    %v1257 = vmul.f32 %v1231, %v1253
    %v1258 = vmul.f32 %v1233, %v1254
    %v1259 = vadd.f32 %v1251, 2.0
    %v1260 = vadd.f32 %v1252, 2.0
    %v1261 = vadd.f32 %v1253, 2.0
    %v1262 = vadd.f32 %v1254, 2.0
    %v1263 = vrcp.pop %v1259
    %v1264 = vmul.f32 %v1255, %v1263
    %v1265 = vrcp.pop %v1260
    %v1266 = vmul.f32 %v1256, %v1265
    %v1267 = vrcp.pop %v1261
    %v1268 = vmul.f32 %v1257, %v1267
    %v1269 = vrcp.pop %v1262
    %v1270 = vmul.f32 %v1258, %v1269
    %vm1271 = vcmp.gt.f32.partialorder %v1227, 20.0
    %vm1272 = vcmp.gt.f32.partialorder %v1229, 20.0
    %vm1273 = vcmp.gt.f32.partialorder %v1231, 20.0
    %vm1274 = vcmp.gt.f32.partialorder %v1233, 20.0
    %v1275 = vsel %vm1271, %v1227, %v1264
    %v1276 = vsel %vm1272, %v1229, %v1266
    %v1277 = vsel %vm1273, %v1231, %v1268
    %v1278 = vsel %vm1274, %v1233, %v1270
    %v1280 = vlaneseq
    %v1281 = vshrl.u32 %v1280, 7
    %v1282 = vsub.s32 0, %v1281
    %v1283 = vrot.slane %v517, %v1282
    %v1284 = vlaneseq
    %v1285 = vshrl.u32 %v1284, 7
    %v1286 = vsub.s32 1, %v1285
    %v1287 = vrot.slane %v517, %v1286
    %v1290 = vmul.f32 %v1275, %v1283
    %v1291 = vmul.f32 %v1276, %v1287
    %v1292 = vmul.f32 %v1277, %v1283
    %v1293 = vmul.f32 %v1278, %v1287
    %v1294 = vadd.f32 %v1290, %v1291
    %1295 = vadd.xlane.f32.xlu0 %v1294
    %v1296 = vpop.xlane.xlu0 %1295
    %v1297 = vadd.f32 %v1292, %v1293
    %1298 = vadd.xlane.f32.xlu0 %v1297
    %v1299 = vpop.xlane.xlu0 %1298
    %v1300 = vadd.f32 %v1296, %v515
    %v1301 = vadd.f32 %v1299, %v515
    %v1302 = vmin.f32 %v1300, 20.0
    %v1303 = vmin.f32 %v1301, 20.0
    %v1304 = vmul.f32 %v1302, 1.442695
    %v1305 = vpow.pop %v1304
    %v1306 = vmul.f32 %v1303, 1.442695
    %v1307 = vpow.pop %v1306
    %v1308 = vadd.f32 %v1305, 2.0
    %v1309 = vadd.f32 %v1307, 2.0
    %v1310 = vmul.f32 %v1305, %v1308
    %v1311 = vmul.f32 %v1307, %v1309
    %v1312 = vmul.f32 %v1300, %v1310
    %v1313 = vmul.f32 %v1301, %v1311
    %v1314 = vadd.f32 %v1310, 2.0
    %v1315 = vadd.f32 %v1311, 2.0
    %v1316 = vrcp.pop %v1314
    %v1317 = vmul.f32 %v1312, %v1316
    %v1318 = vrcp.pop %v1315
    %v1319 = vmul.f32 %v1313, %v1318
    %vm1320 = vcmp.gt.f32.partialorder %v1300, 20.0
    %vm1321 = vcmp.gt.f32.partialorder %v1301, 20.0
    %v1322 = vsel %vm1320, %v1300, %v1317
    %v1323 = vsel %vm1321, %v1301, %v1319
    %vm1324 = vcmask 7168
    %1325 = vst.msk [vmem:[%s9] sm:$0xff] %vm1324, %v1322
    %1326 = vst.msk [vmem:[%s9 + $0x8] sm:$0xff] %vm1324, %v1323
    // Predicated region
    $region50: #{tpu_custom_call.1} parent=1 // pred_check
      _
    $region51: #{tpu_custom_call.1} parent=1 // pred_check_branch
      %1328 = sbr.rel (0) target = $region53
    $region52: #{tpu_custom_call.1} parent=1 // pred_region
      _
    $region53: #{tpu_custom_call.1} parent=1 // pred_fallthru
      _
    // Predicated region
    $region54: #{tpu_custom_call.1} parent=1 // pred_check
      _
    $region55: #{tpu_custom_call.1} parent=1 // pred_check_branch
      %1330 = sbr.rel (0) target = $region57
    $region56: #{tpu_custom_call.1} parent=1 // pred_region
      _
    $region57: #{tpu_custom_call.1} parent=1 // pred_fallthru
      _
    %1331 = vsyncpa [#allocation3], 1
    %1332 = vsyncpa [#allocation5], 1

</llo_original>
